<compile_context>
chip_gen: v7x
topology: tpu7x:2x2x1
jax: 0.10.0
libtpu: 0.0.40
codegen_flags: <defaults>
</compile_context>

<pallas_src>
import jax
import jax.numpy as jnp
from jax.experimental import pallas as pl
from jax.experimental.pallas import tpu as pltpu


def _round_up(x, m):
    return (x + m - 1) // m * m


def _patch_embed_kernel(p_ref, w_ref, b_ref, o_ref):
    # p_ref: (TM, K) bf16 patch rows (streamed over M)
    # w_ref: (E_pad, K) bf16 projection weight (resident)
    # b_ref: (1, E_pad) f32 bias (resident)
    # o_ref: (TM, E_pad) output tile
    acc = jax.lax.dot_general(
        p_ref[...], w_ref[...],
        dimension_numbers=(((1,), (1,)), ((), ())),   # contract K with K
        preferred_element_type=jnp.float32)
    o_ref[...] = (acc + b_ref[...]).astype(o_ref.dtype)


def patch_embedding(x, weight, bias, patch_size, *, tm=512):
    """x: (B, C, H, W); weight: (E, C, ph, pw); bias: (E,) -> (B, num_patches, E)."""
    B, C, H, W = x.shape
    E = weight.shape[0]
    ph, pw = patch_size
    assert H % ph == 0 and W % pw == 0
    nh, nw = H // ph, W // pw
    num_patches = nh * nw
    K = C * ph * pw
    M = B * num_patches
    E_pad = _round_up(E, 128)          # lane-dense output stores

    # Cast to bf16 *before* the patch transpose so that extra HBM pass moves
    # half the bytes.  Inner flatten order (c, kh, kw) matches the Conv2d
    # weight flatten order, so the strided conv becomes one matmul.
    # TODO(synk): feed NCHW directly via a per-M-tile gather index_map to
    # remove this standalone transpose pass entirely.
    x_bf = x.astype(jnp.bfloat16)
    patches = (
        x_bf.reshape(B, C, nh, ph, nw, pw)
        .transpose(0, 2, 4, 1, 3, 5)            # (B, nh, nw, C, ph, pw)
        .reshape(M, K)
    )

    # Weight stays (E, K): a free reshape of the contiguous (E, C, ph, pw)
    # Conv2d weight -- no transposed copy written to HBM.
    w_mat = weight.reshape(E, K).astype(jnp.bfloat16)
    b_vec = bias.astype(jnp.float32)
    if E_pad != E:
        w_mat = jnp.pad(w_mat, ((0, E_pad - E), (0, 0)))
        b_vec = jnp.pad(b_vec, (0, E_pad - E))
    b_mat = b_vec.reshape(1, E_pad)

    # Tile size over M: 512 rows (8-aligned) works within v5e's 16 MiB scoped
    # VMEM and v7x's 64 MiB physical VMEM for typical ViT K/E.
    TM = min(tm, _round_up(M, 8))
    M_pad = _round_up(M, TM)
    if M_pad != M:
        # Keep every block full (no partial tiles); padded rows are discarded.
        patches = jnp.pad(patches, ((0, M_pad - M), (0, 0)))
    grid = (M_pad // TM,)

    out_itemsize = jnp.dtype(x.dtype).itemsize
    vmem_bytes = (2 * TM * K * 2                     # double-buffered bf16 patch tiles
                  + E_pad * K * 2                    # resident bf16 weight
                  + 2 * TM * E_pad * out_itemsize    # double-buffered output tiles
                  + E_pad * 4)                       # resident bias
    vmem_limit = int(min(max(2 * vmem_bytes, 32 * 1024 * 1024),
                         64 * 1024 * 1024))          # stay inside v7x's 64 MiB

    cost = pl.CostEstimate(
        flops=2 * M_pad * K * E_pad,
        transcendentals=0,
        bytes_accessed=(M_pad * K * 2 + E_pad * K * 2 + E_pad * 4
                        + M_pad * E_pad * out_itemsize),
    )

    out = pl.pallas_call(
        _patch_embed_kernel,
        out_shape=jax.ShapeDtypeStruct((M_pad, E_pad), x.dtype),
        grid=grid,
        in_specs=[
            pl.BlockSpec((TM, K), lambda i: (i, 0)),       # streamed over M
            pl.BlockSpec((E_pad, K), lambda i: (0, 0)),    # resident weight
            pl.BlockSpec((1, E_pad), lambda i: (0, 0)),    # resident bias
        ],
        out_specs=pl.BlockSpec((TM, E_pad), lambda i: (i, 0)),
        compiler_params=pltpu.CompilerParams(
            dimension_semantics=("parallel",),
            vmem_limit_bytes=vmem_limit),
        cost_estimate=cost,
    )(patches, w_mat, b_mat)

    return out[:M, :E].reshape(B, num_patches, E)


if __name__ == "__main__":
    # Small shapes consistent with the module: patch_size=(16, 8)
    B, C, H, W = 2, 4, 16, 16
    psz = (16, 8)
    embed_dim = 32

    key = jax.random.PRNGKey(0)
    kx, kw, kb = jax.random.split(key, 3)
    x = jax.random.normal(kx, (B, C, H, W), dtype=jnp.float32)
    # Conv2d-shaped parameters: (E, C, ph, pw) and (E,)
    weight = jax.random.normal(kw, (embed_dim, C, psz[0], psz[1]),
                               dtype=jnp.float32) * 0.02
    bias = jax.random.normal(kb, (embed_dim,), dtype=jnp.float32) * 0.02

    out = patch_embedding(x, weight, bias, psz)
    out = jax.block_until_ready(out)

    # Pure-JAX f32 reference (same patch extraction + einsum).
    ph, pw = psz
    nh, nw = H // ph, W // pw
    patches_ref = (x.reshape(B, C, nh, ph, nw, pw)
                   .transpose(0, 2, 4, 1, 3, 5)
                   .reshape(B, nh * nw, C * ph * pw))
    ref = jnp.einsum("bpk,ek->bpe", patches_ref,
                     weight.reshape(embed_dim, -1)) + bias

    assert out.shape == (B, nh * nw, embed_dim)
    # bf16 MXU inputs with f32 accumulation -> loosened tolerance vs f32 ref.
    assert jnp.allclose(out, ref, atol=2e-2, rtol=2e-2)

    print("KERNEL_OK")
</pallas_src>

<mosaic_0001>
module attributes {stable_mosaic.version = 11 : i64} {
  func.func @_patch_embed_kernel(%arg0: i32, %arg1: memref<8x512xbf16, #tpu.memory_space<vmem>>, %arg2: memref<128x512xbf16, #tpu.memory_space<vmem>>, %arg3: memref<1x128xf32, #tpu.memory_space<vmem>>, %arg4: memref<8x128xf32, #tpu.memory_space<vmem>>) attributes {dimension_semantics = [#tpu.dimension_semantics<parallel>], iteration_bounds = array<i64: 1>, scalar_prefetch = 0 : i64, scratch_operands = 0 : i64, tpu.core_type = #tpu.core_type<tc>, window_params = [{transform_indices = @transform_0, window_bounds = array<i64: 8, 512>}, {pipeline_mode = #tpu.pipeline_mode<synchronous>, transform_indices = @transform_1, window_bounds = array<i64: 128, 512>}, {pipeline_mode = #tpu.pipeline_mode<synchronous>, transform_indices = @transform_2, window_bounds = array<i64: 1, 128>}, {transform_indices = @transform_3, window_bounds = array<i64: 8, 128>}]} {
    %c0 = arith.constant 0 : index
    %c0_0 = arith.constant 0 : index
    %0 = vector.load %arg1[%c0, %c0_0] : memref<8x512xbf16, #tpu.memory_space<vmem>>, vector<8x512xbf16>
    %c0_1 = arith.constant 0 : index
    %c0_2 = arith.constant 0 : index
    %1 = vector.load %arg2[%c0_1, %c0_2] : memref<128x512xbf16, #tpu.memory_space<vmem>>, vector<128x512xbf16>
    %cst = arith.constant dense<0.000000e+00> : vector<8x128xf32>
    %2 = tpu.matmul %0, %1, %cst {dimension_numbers = #tpu.dot_dimension_numbers<[1], [1], [0], [0], [0, 0, 1, 0], [], []>} : vector<8x512xbf16>, vector<128x512xbf16>, vector<8x128xf32> -> vector<8x128xf32>
    %c0_3 = arith.constant 0 : index
    %c0_4 = arith.constant 0 : index
    %3 = vector.load %arg3[%c0_3, %c0_4] : memref<1x128xf32, #tpu.memory_space<vmem>>, vector<1x128xf32>
    %4 = vector.broadcast %3 : vector<1x128xf32> to vector<8x128xf32>
    %5 = arith.addf %2, %4 : vector<8x128xf32>
    %c0_5 = arith.constant 0 : index
    %c0_6 = arith.constant 0 : index
    %6 = vector.load %arg4[%c0_5, %c0_6] : memref<8x128xf32, #tpu.memory_space<vmem>>, vector<8x128xf32>
    tpu.vector_store %arg4[%c0_5, %c0_6], %5 {strides = array<i32>} : memref<8x128xf32, #tpu.memory_space<vmem>>, vector<8x128xf32>,
    return
  }
  func.func @transform_0(%arg0: i32) -> (i32, i32) {
    %c0_i32 = arith.constant 0 : i32
    %c0_i32_0 = arith.constant 0 : i32
    return %arg0, %c0_i32 : i32, i32
  }
  func.func @transform_1(%arg0: i32) -> (i32, i32) {
    %c0_i32 = arith.constant 0 : i32
    %c0_i32_0 = arith.constant 0 : i32
    %c0_i32_1 = arith.constant 0 : i32
    return %c0_i32, %c0_i32_0 : i32, i32
  }
  func.func @transform_2(%arg0: i32) -> (i32, i32) {
    %c0_i32 = arith.constant 0 : i32
    %c0_i32_0 = arith.constant 0 : i32
    %c0_i32_1 = arith.constant 0 : i32
    return %c0_i32, %c0_i32_0 : i32, i32
  }
  func.func @transform_3(%arg0: i32) -> (i32, i32) {
    %c0_i32 = arith.constant 0 : i32
    %c0_i32_0 = arith.constant 0 : i32
    return %arg0, %c0_i32 : i32, i32
  }
}

</mosaic_0001>

<llo_original>
// kernel: tpu_custom_call.1
$region0: #{tpu_custom_call.1}
  #allocation0 [shape = 'u32[]', space=smem, size = 0x4, offset = 0x4, fixed_abs, tag = 'smem constant byte address 0x4 - core index']
  #allocation1 [shape = 'u32[144,128]{1,0:T(1,128)}', space=vmem, size = 0x12000, scoped, tag = 'internal scratch']
  %s0 = inlined_call_operand.hbm [shape: bf16[8,512], index: 0, kind: input, shape index: {}]
  %s1 = inlined_call_operand.hbm [shape: bf16[128,512], index: 1, kind: input, shape index: {}]
  %s2 = inlined_call_operand.vmem [shape: f32[1,128], index: 2, kind: input, shape index: {}]
  %s3 = inlined_call_operand.hbm [shape: f32[8,128], index: 3, kind: output, shape index: {}]
  %s4 = sld [smem:[#allocation0]]
  $region30: #{tpu_custom_call.1} parent=0
    _
  %s6 = ssub.s32 1, %s4
  %s7 = scalar_select 0, %s6, %s4
  $region1: #{tpu_custom_call.1} parent=0
    #allocation2 [shape = 'u8[8192]{0}', space=vmem, size = 0x2000, scoped, tag = 'input window, operand 0, single buffered']
    #allocation3 [shape = 's32[1]{0}', space=sflag, size = 0x4, scoped, tag = 'scoped memory for tpu_custom_call.1']
    #allocation4 [shape = 's32[1]{0}', space=sflag, size = 0x4, scoped, tag = 'scoped memory for tpu_custom_call.1']
    #allocation5 [shape = 'u8[131072]{0}', space=vmem, size = 0x20000, scoped, tag = 'input window, operand 1, single buffered']
    #allocation6 [shape = 's32[1]{0}', space=sflag, size = 0x4, scoped, tag = 'scoped memory for tpu_custom_call.1']
    #allocation7 [shape = 'u8[4096]{0}', space=vmem, size = 0x1000, scoped, tag = 'output window, operand 0, single buffered']
    %8 = vsyncpa [#allocation3], 0
    %9 = vsyncpa [#allocation6], 0
    %10 = vsyncpa [#allocation4], 0
    // Predicated region
    $region2: #{tpu_custom_call.1} parent=1 // pred_check
      _
    $region3: #{tpu_custom_call.1} parent=1 // pred_check_branch
      %12 = sbr.rel (0) target = $region5
    $region4: #{tpu_custom_call.1} parent=1 // pred_region
      %s14 = ssub.s32 256, 256
      %15 = vsyncadd [#allocation3], %s14
      %s17 = sshll.u32 [#allocation2], 4
      %s18 = int_to_ptr.vmem [resolvable:$true] %s17
      %20 = dma.hbm_to_vmem [thread:$0]  %s0, 256, %s18, [#allocation3]
    $region5: #{tpu_custom_call.1} parent=1 // pred_fallthru
      _
    // Predicated region
    $region6: #{tpu_custom_call.1} parent=1 // pred_check
      _
    $region7: #{tpu_custom_call.1} parent=1 // pred_check_branch
      %22 = sbr.rel (0) target = $region9
    $region8: #{tpu_custom_call.1} parent=1 // pred_region
      %s24 = ssub.s32 4096, 4096
      %25 = vsyncadd [#allocation6], %s24
      %s26 = sshll.u32 [#allocation5], 4
      %s27 = int_to_ptr.vmem [resolvable:$true] %s26
      %32 = dma.hbm_to_vmem [thread:$0]  %s1, 4096, %s27, [#allocation6], 256, 256, 16
    $region9: #{tpu_custom_call.1} parent=1 // pred_fallthru
      _
    // Predicated region
    $region10: #{tpu_custom_call.1} parent=1 // pred_check
      _
    $region11: #{tpu_custom_call.1} parent=1 // pred_check_branch
      %34 = sbr.rel (0) target = $region13
    $region12: #{tpu_custom_call.1} parent=1 // pred_region
      _
    $region13: #{tpu_custom_call.1} parent=1 // pred_fallthru
      _
    // Predicated region
    $region14: #{tpu_custom_call.1} parent=1 // pred_check
      _
    $region15: #{tpu_custom_call.1} parent=1 // pred_check_branch
      %36 = sbr.rel (0) target = $region17
    $region16: #{tpu_custom_call.1} parent=1 // pred_region
      %37 = dma.done [#allocation3], 256
    $region17: #{tpu_custom_call.1} parent=1 // pred_fallthru
      _
    // Predicated region
    $region18: #{tpu_custom_call.1} parent=1 // pred_check
      _
    $region19: #{tpu_custom_call.1} parent=1 // pred_check_branch
      %39 = sbr.rel (0) target = $region21
    $region20: #{tpu_custom_call.1} parent=1 // pred_region
      %40 = dma.done [#allocation6], 4096
    $region21: #{tpu_custom_call.1} parent=1 // pred_fallthru
      _
    %v42 = vld [vmem:[#allocation2] sm:$0xff]
    %v43 = vld [vmem:[#allocation2 + $0x8] sm:$0xff]
    %v44 = vld [vmem:[#allocation5] sm:$0xff]
    %v45 = vld [vmem:[#allocation5 + $0x8] sm:$0xff]
    %v46 = vld [vmem:[#allocation5 + $0x10] sm:$0xff]
    %v47 = vld [vmem:[#allocation5 + $0x18] sm:$0xff]
    %v48 = vld [vmem:[#allocation5 + $0x20] sm:$0xff]
    %v49 = vld [vmem:[#allocation5 + $0x28] sm:$0xff]
    %v50 = vld [vmem:[#allocation5 + $0x30] sm:$0xff]
    %v51 = vld [vmem:[#allocation5 + $0x38] sm:$0xff]
    %v52 = vld [vmem:[#allocation5 + $0x40] sm:$0xff]
    %v53 = vld [vmem:[#allocation5 + $0x48] sm:$0xff]
    %v54 = vld [vmem:[#allocation5 + $0x50] sm:$0xff]
    %v55 = vld [vmem:[#allocation5 + $0x58] sm:$0xff]
    %v56 = vld [vmem:[#allocation5 + $0x60] sm:$0xff]
    %v57 = vld [vmem:[#allocation5 + $0x68] sm:$0xff]
    %v58 = vld [vmem:[#allocation5 + $0x70] sm:$0xff]
    %v59 = vld [vmem:[#allocation5 + $0x78] sm:$0xff]
    %v60 = vld [vmem:[#allocation5 + $0x80] sm:$0xff]
    %v61 = vld [vmem:[#allocation5 + $0x88] sm:$0xff]
    %v62 = vld [vmem:[#allocation5 + $0x90] sm:$0xff]
    %v63 = vld [vmem:[#allocation5 + $0x98] sm:$0xff]
    %v64 = vld [vmem:[#allocation5 + $0xa0] sm:$0xff]
    %v65 = vld [vmem:[#allocation5 + $0xa8] sm:$0xff]
    %v66 = vld [vmem:[#allocation5 + $0xb0] sm:$0xff]
    %v67 = vld [vmem:[#allocation5 + $0xb8] sm:$0xff]
    %v68 = vld [vmem:[#allocation5 + $0xc0] sm:$0xff]
    %v69 = vld [vmem:[#allocation5 + $0xc8] sm:$0xff]
    %v70 = vld [vmem:[#allocation5 + $0xd0] sm:$0xff]
    %v71 = vld [vmem:[#allocation5 + $0xd8] sm:$0xff]
    %v72 = vld [vmem:[#allocation5 + $0xe0] sm:$0xff]
    %v73 = vld [vmem:[#allocation5 + $0xe8] sm:$0xff]
    %v74 = vld [vmem:[#allocation5 + $0xf0] sm:$0xff]
    %v75 = vld [vmem:[#allocation5 + $0xf8] sm:$0xff]
    %v76 = vld [vmem:[%s2] sm:$0x1]
    %v78 = vlaneseq
    %v79 = vshrl.u32 %v78, 7
    %v80 = vsub.s32 0, %v79
    %v81 = vrot.slane %v76, %v80
    %v85 = vunpack.c.l.b16 %v42
    %v86 = vunpack.c.h.b16 %v42
    %v87 = vunpack.c.l.b16 %v43
    %v88 = vunpack.c.h.b16 %v43
    %v89 = vpack.c.b16 %v85, %v85
    %v90 = vpack.c.b16 %v86, %v86
    %v91 = vpack.c.b16 %v87, %v87
    %v92 = vpack.c.b16 %v88, %v88
    %v129 = vunpack.c.l.b16 %v44
    %v130 = vunpack.c.h.b16 %v44
    %v131 = vunpack.c.l.b16 %v45
    %v132 = vunpack.c.h.b16 %v45
    %v133 = vunpack.c.l.b16 %v46
    %v134 = vunpack.c.h.b16 %v46
    %v135 = vunpack.c.l.b16 %v47
    %v136 = vunpack.c.h.b16 %v47
    %v137 = vunpack.c.l.b16 %v48
    %v138 = vunpack.c.h.b16 %v48
    %v139 = vunpack.c.l.b16 %v49
    %v140 = vunpack.c.h.b16 %v49
    %v141 = vunpack.c.l.b16 %v50
    %v142 = vunpack.c.h.b16 %v50
    %v143 = vunpack.c.l.b16 %v51
    %v144 = vunpack.c.h.b16 %v51
    %v145 = vunpack.c.l.b16 %v52
    %v146 = vunpack.c.h.b16 %v52
    %v147 = vunpack.c.l.b16 %v53
    %v148 = vunpack.c.h.b16 %v53
    %v149 = vunpack.c.l.b16 %v54
    %v150 = vunpack.c.h.b16 %v54
    %v151 = vunpack.c.l.b16 %v55
    %v152 = vunpack.c.h.b16 %v55
    %v153 = vunpack.c.l.b16 %v56
    %v154 = vunpack.c.h.b16 %v56
    %v155 = vunpack.c.l.b16 %v57
    %v156 = vunpack.c.h.b16 %v57
    %v157 = vunpack.c.l.b16 %v58
    %v158 = vunpack.c.h.b16 %v58
    %v159 = vunpack.c.l.b16 %v59
    %v160 = vunpack.c.h.b16 %v59
    %v161 = vunpack.c.l.b16 %v60
    %v162 = vunpack.c.h.b16 %v60
    %v163 = vunpack.c.l.b16 %v61
    %v164 = vunpack.c.h.b16 %v61
    %v165 = vunpack.c.l.b16 %v62
    %v166 = vunpack.c.h.b16 %v62
    %v167 = vunpack.c.l.b16 %v63
    %v168 = vunpack.c.h.b16 %v63
    %v169 = vunpack.c.l.b16 %v64
    %v170 = vunpack.c.h.b16 %v64
    %v171 = vunpack.c.l.b16 %v65
    %v172 = vunpack.c.h.b16 %v65
    %v173 = vunpack.c.l.b16 %v66
    %v174 = vunpack.c.h.b16 %v66
    %v175 = vunpack.c.l.b16 %v67
    %v176 = vunpack.c.h.b16 %v67
    %v177 = vunpack.c.l.b16 %v68
    %v178 = vunpack.c.h.b16 %v68
    %v179 = vunpack.c.l.b16 %v69
    %v180 = vunpack.c.h.b16 %v69
    %v181 = vunpack.c.l.b16 %v70
    %v182 = vunpack.c.h.b16 %v70
    %v183 = vunpack.c.l.b16 %v71
    %v184 = vunpack.c.h.b16 %v71
    %v185 = vunpack.c.l.b16 %v72
    %v186 = vunpack.c.h.b16 %v72
    %v187 = vunpack.c.l.b16 %v73
    %v188 = vunpack.c.h.b16 %v73
    %v189 = vunpack.c.l.b16 %v74
    %v190 = vunpack.c.h.b16 %v74
    %v191 = vunpack.c.l.b16 %v75
    %v192 = vunpack.c.h.b16 %v75
    %v193 = vpack.c.b16 %v133, %v129
    %v194 = vpack.c.b16 %v134, %v130
    %v195 = vpack.c.b16 %v135, %v131
    %v196 = vpack.c.b16 %v136, %v132
    %v197 = vpack.c.b16 %v141, %v137
    %v198 = vpack.c.b16 %v142, %v138
    %v199 = vpack.c.b16 %v143, %v139
    %v200 = vpack.c.b16 %v144, %v140
    %v201 = vpack.c.b16 %v149, %v145
    %v202 = vpack.c.b16 %v150, %v146
    %v203 = vpack.c.b16 %v151, %v147
    %v204 = vpack.c.b16 %v152, %v148
    %v205 = vpack.c.b16 %v157, %v153
    %v206 = vpack.c.b16 %v158, %v154
    %v207 = vpack.c.b16 %v159, %v155
    %v208 = vpack.c.b16 %v160, %v156
    %v209 = vpack.c.b16 %v165, %v161
    %v210 = vpack.c.b16 %v166, %v162
    %v211 = vpack.c.b16 %v167, %v163
    %v212 = vpack.c.b16 %v168, %v164
    %v213 = vpack.c.b16 %v173, %v169
    %v214 = vpack.c.b16 %v174, %v170
    %v215 = vpack.c.b16 %v175, %v171
    %v216 = vpack.c.b16 %v176, %v172
    %v217 = vpack.c.b16 %v181, %v177
    %v218 = vpack.c.b16 %v182, %v178
    %v219 = vpack.c.b16 %v183, %v179
    %v220 = vpack.c.b16 %v184, %v180
    %v221 = vpack.c.b16 %v189, %v185
    %v222 = vpack.c.b16 %v190, %v186
    %v223 = vpack.c.b16 %v191, %v187
    %v224 = vpack.c.b16 %v192, %v188
    %257 = vmatprep.subr.bf16.mxu0 %v194
    %258 = vmatpush1.bf16.xpose.msra.mxu0 %v193
    %259 = vmatprep.subr.bf16.mxu0 %v198
    %260 = vmatpush1.bf16.xpose.msra.mxu0 %v197
    %261 = vmatprep.subr.bf16.mxu0 %v202
    %262 = vmatpush1.bf16.xpose.msra.mxu0 %v201
    %263 = vmatprep.subr.bf16.mxu0 %v206
    %264 = vmatpush1.bf16.xpose.msra.mxu0 %v205
    %265 = vmatprep.subr.bf16.mxu0 %v210
    %266 = vmatpush1.bf16.xpose.msra.mxu0 %v209
    %267 = vmatprep.subr.bf16.mxu0 %v214
    %268 = vmatpush1.bf16.xpose.msra.mxu0 %v213
    %269 = vmatprep.subr.bf16.mxu0 %v218
    %270 = vmatpush1.bf16.xpose.msra.mxu0 %v217
    %271 = vmatprep.subr.bf16.mxu0 %v222
    %272 = vmatpush1.bf16.xpose.msra.mxu0 %v221
    %273 = vmatprep.subr.bf16.mxu0 0
    %274 = vmatpush1.bf16.xpose.msra.mxu0 0
    %275 = vmatprep.subr.bf16.mxu0 0
    %276 = vmatpush1.bf16.xpose.msra.mxu0 0
    %277 = vmatprep.subr.bf16.mxu0 0
    %278 = vmatpush1.bf16.xpose.msra.mxu0 0
    %279 = vmatprep.subr.bf16.mxu0 0
    %280 = vmatpush1.bf16.xpose.msra.mxu0 0
    %281 = vmatprep.subr.bf16.mxu0 0
    %282 = vmatpush1.bf16.xpose.msra.mxu0 0
    %283 = vmatprep.subr.bf16.mxu0 0
    %284 = vmatpush1.bf16.xpose.msra.mxu0 0
    %285 = vmatprep.subr.bf16.mxu0 0
    %286 = vmatpush1.bf16.xpose.msra.mxu0 0
    %287 = vmatprep.subr.bf16.mxu0 0
    %288 = vmatpush1.bf16.xpose.msra.mxu0 0
    %289 = vmatprep.mubr.bf16.mxu0 %v90
    %290 = vmatmul.mubr.bf16.gmra.mrb[0].mxu0 %v89
    %v291 = vpop.f32.mrb[0].mxu0
    %v292 = vadd.f32 %v81, %v291
    %v293 = vpop.f32.mrb[0].mxu0
    %v294 = vpop.f32.mrb[0].mxu0
    %v295 = vpop.f32.mrb[0].mxu0
    %296 = vdwg.mxu0
    %297 = vmatprep.subr.bf16.mxu0 %v196
    %298 = vmatpush1.bf16.xpose.msra.mxu0 %v195
    %299 = vmatprep.subr.bf16.mxu0 %v200
    %300 = vmatpush1.bf16.xpose.msra.mxu0 %v199
    %301 = vmatprep.subr.bf16.mxu0 %v204
    %302 = vmatpush1.bf16.xpose.msra.mxu0 %v203
    %303 = vmatprep.subr.bf16.mxu0 %v208
    %304 = vmatpush1.bf16.xpose.msra.mxu0 %v207
    %305 = vmatprep.subr.bf16.mxu0 %v212
    %306 = vmatpush1.bf16.xpose.msra.mxu0 %v211
    %307 = vmatprep.subr.bf16.mxu0 %v216
    %308 = vmatpush1.bf16.xpose.msra.mxu0 %v215
    %309 = vmatprep.subr.bf16.mxu0 %v220
    %310 = vmatpush1.bf16.xpose.msra.mxu0 %v219
    %311 = vmatprep.subr.bf16.mxu0 %v224
    %312 = vmatpush1.bf16.xpose.msra.mxu0 %v223
    %313 = vmatprep.subr.bf16.mxu0 0
    %314 = vmatpush1.bf16.xpose.msra.mxu0 0
    %315 = vmatprep.subr.bf16.mxu0 0
    %316 = vmatpush1.bf16.xpose.msra.mxu0 0
    %317 = vmatprep.subr.bf16.mxu0 0
    %318 = vmatpush1.bf16.xpose.msra.mxu0 0
    %319 = vmatprep.subr.bf16.mxu0 0
    %320 = vmatpush1.bf16.xpose.msra.mxu0 0
    %321 = vmatprep.subr.bf16.mxu0 0
    %322 = vmatpush1.bf16.xpose.msra.mxu0 0
    %323 = vmatprep.subr.bf16.mxu0 0
    %324 = vmatpush1.bf16.xpose.msra.mxu0 0
    %325 = vmatprep.subr.bf16.mxu0 0
    %326 = vmatpush1.bf16.xpose.msra.mxu0 0
    %327 = vmatprep.subr.bf16.mxu0 0
    %328 = vmatpush1.bf16.xpose.msra.mxu0 0
    %329 = vmatprep.mubr.bf16.mxu0 %v92
    %330 = vmatmul.mubr.bf16.gmra.mrb[0].mxu0 %v91
    %v331 = vpop.f32.mrb[0].mxu0
    %v332 = vadd.f32 %v292, %v331
    %v333 = vpop.f32.mrb[0].mxu0
    %v334 = vpop.f32.mrb[0].mxu0
    %v335 = vpop.f32.mrb[0].mxu0
    %336 = vdwg.mxu0
    %337 = vst [vmem:[#allocation7] sm:$0xff] %v332
    // Predicated region
    $region22: #{tpu_custom_call.1} parent=1 // pred_check
      _
    $region23: #{tpu_custom_call.1} parent=1 // pred_check_branch
      %339 = sbr.rel (0) target = $region25
    $region24: #{tpu_custom_call.1} parent=1 // pred_region
      %s341 = ssub.s32 128, 128
      %342 = vsyncadd [#allocation4], %s341
      %s344 = sshll.u32 [#allocation7], 4
      %s345 = int_to_ptr.vmem [resolvable:$true] %s344
      %347 = dma.vmem_to_hbm [thread:$0]  %s345, 128, %s3, [#allocation4]
    $region25: #{tpu_custom_call.1} parent=1 // pred_fallthru
      _
    // Predicated region
    $region26: #{tpu_custom_call.1} parent=1 // pred_check
      _
    $region27: #{tpu_custom_call.1} parent=1 // pred_check_branch
      %349 = sbr.rel (0) target = $region29
    $region28: #{tpu_custom_call.1} parent=1 // pred_region
      %350 = dma.done [#allocation4], 128
    $region29: #{tpu_custom_call.1} parent=1 // pred_fallthru
      _
    %351 = vsyncpa [#allocation3], 1
    %352 = vsyncpa [#allocation6], 1
    %353 = vsyncpa [#allocation4], 1

</llo_original>
